<compile_context>
chip_gen: v7x
topology: tpu7x:2x2x1
jax: 0.10.0
libtpu: 0.0.40
codegen_flags: <defaults>
</compile_context>

<pallas_src>
import numpy as np
import jax
import jax.numpy as jnp
from jax import lax
from jax.experimental import pallas as pl
from jax.experimental.pallas import tpu as pltpu


# ----------------------------------------------------------------------------
# Pallas kernel: complex elementwise multiply in the (unshifted) frequency
# domain:  y = x * W   with  x = a + i*b,  W = wr + i*wi  (W broadcast over rows)
# ----------------------------------------------------------------------------
def _freq_filter_kernel(xr_ref, xi_ref, wr_ref, wi_ref, yr_ref, yi_ref):
    a = xr_ref[...]
    b = xi_ref[...]
    wr = wr_ref[...]          # (1, tn) — broadcast over the tm rows
    wi = wi_ref[...]
    yr_ref[...] = a * wr - b * wi
    yi_ref[...] = a * wi + b * wr


def freq_filter(xr, xi, wr, wi, *, target_block_bytes=2 << 20):
    """xr, xi: (R, HW) f32 spectra; wr, wi: (1, HW) f32 folded filter.

    Returns (yr, yi) with shape (R, HW).  2-D tiled (rows x lanes), lane-dense,
    ~2 MiB blocks, no padding/slicing of the row dimension.
    """
    R, HW = xr.shape
    target_elems = max(1, target_block_bytes // 4)

    # ---- lane (last-dim) tile: multiple of 128, or the full extent ----------
    if HW % 128 == 0:
        tn = min(HW, 16384)               # 16384 * 4 B = 64 KiB per row slab
    else:
        # TODO(synk): non-128-divisible planes cannot be lane-tiled; the whole
        # plane becomes one lane block (fine for all realistic feature maps).
        tn = HW

    # ---- sublane (row) tile: multiple of 8, or the full extent --------------
    tm = max(8, (target_elems // tn) // 8 * 8)
    if tm >= R:
        tm = R                            # full-extent row block (any R is legal)

    grid = (pl.cdiv(R, tm), pl.cdiv(HW, tn))
    x_spec = pl.BlockSpec((tm, tn), lambda i, j: (i, j))
    w_spec = pl.BlockSpec((1, tn), lambda i, j: (0, j))

    yr, yi = pl.pallas_call(
        _freq_filter_kernel,
        out_shape=(jax.ShapeDtypeStruct((R, HW), jnp.float32),
                   jax.ShapeDtypeStruct((R, HW), jnp.float32)),
        grid=grid,
        in_specs=[x_spec, x_spec, w_spec, w_spec],
        out_specs=(x_spec, x_spec),
        compiler_params=pltpu.CompilerParams(
            dimension_semantics=("parallel", "parallel"),
            vmem_limit_bytes=32 * 1024 * 1024),
    )(xr, xi, wr, wi)
    return yr, yi


# ----------------------------------------------------------------------------
# Host-side constant folding: bilinear resize + mask fold + spatial ifftshift
# ----------------------------------------------------------------------------
def bilinear_matrix(out_size, in_size):
    """1-D interpolation matrix matching F.interpolate(mode='bilinear',
    align_corners=False) along one axis."""
    scale = in_size / out_size
    idx = np.arange(out_size)
    src = (idx + 0.5) * scale - 0.5
    src = np.maximum(src, 0.0)
    i0 = np.minimum(np.floor(src).astype(np.int64), in_size - 1)
    i1 = np.minimum(i0 + 1, in_size - 1)
    frac = (src - i0).astype(np.float32)
    M = np.zeros((out_size, in_size), dtype=np.float32)
    M[idx, i0] += (1.0 - frac)
    M[idx, i1] += frac
    return M


def make_agf_filter(base_filter, h, w, ratio=10):
    """Fold mask_low / mask_high, the resized complex base filter and the
    spatial fftshift/ifftshift into one multiplier for the UNSHIFTED spectrum."""
    crow, ccol = h // 2, w // 2
    r = min(ratio, crow, ccol)
    mask = np.zeros((h, w), np.float32)
    mask[crow - r:crow + r, ccol - r:ccol + r] = 1.0

    bf = np.asarray(base_filter, np.float32)          # (1, 64, 64, 2)
    Mh = bilinear_matrix(h, bf.shape[1])
    Mw = bilinear_matrix(w, bf.shape[2])
    fr = Mh @ bf[0, :, :, 0] @ Mw.T                   # real part, (h, w)
    fi = Mh @ bf[0, :, :, 1] @ Mw.T                   # imag part, (h, w)

    wr = mask * fr + (1.0 - mask)                     # mask folded in (host)
    wi = mask * fi
    wr = np.fft.ifftshift(wr)                         # spatial shift folded in
    wi = np.fft.ifftshift(wi)
    return (jnp.asarray(wr.reshape(1, h * w), jnp.float32),
            jnp.asarray(wi.reshape(1, h * w), jnp.float32))


# ----------------------------------------------------------------------------
# Adaptive_global_filter forward
# ----------------------------------------------------------------------------
def adaptive_global_filter(x, wr, wi):
    """x: (B, C, H, W) float32. wr/wi: (1, H*W) folded filter constants."""
    B, C, H, W = x.shape
    # TODO(synk): FFT/IFFT have no Pallas equivalent; computed with jnp.fft (XLA).
    # Note: the real/imag split + lax.complex repack are left to XLA because
    # lax.bitcast_convert_type rejects complex dtypes (no interleaved-view trick).
    x_fre = jnp.fft.fft2(x, axes=(-2, -1), norm='ortho')
    xr = jnp.real(x_fre).astype(jnp.float32).reshape(B * C, H * W)
    xi = jnp.imag(x_fre).astype(jnp.float32).reshape(B * C, H * W)

    yr, yi = freq_filter(xr, xi, wr, wi)

    y = lax.complex(yr.reshape(B, C, H, W), yi.reshape(B, C, H, W))
    out = jnp.fft.ifft2(y, axes=(-2, -1)).real.astype(jnp.float32)
    # Reproduce the reference's leftover batch/channel permutation (fftshift was
    # applied over ALL axes, ifftshift only over the spatial ones) cheaply:
    return jnp.roll(out, shift=(B // 2, C // 2), axis=(0, 1))


# ----------------------------------------------------------------------------
# Pure-jnp replica of the original PyTorch forward (for self-checking only)
# ----------------------------------------------------------------------------
def _reference_forward(x, base_filter, ratio=10):
    B, C, H, W = x.shape
    crow, ccol = H // 2, W // 2
    r = min(ratio, crow, ccol)
    mask_low = np.zeros((H, W), np.float32)
    mask_low[crow - r:crow + r, ccol - r:ccol + r] = 1.0
    mask_high = 1.0 - mask_low
    bf = np.asarray(base_filter, np.float32)
    Mh = bilinear_matrix(H, bf.shape[1])
    Mw = bilinear_matrix(W, bf.shape[2])
    fr = Mh @ bf[0, :, :, 0] @ Mw.T
    fi = Mh @ bf[0, :, :, 1] @ Mw.T
    weight = (fr + 1j * fi).astype(np.complex64)
    x_fre = jnp.fft.fftshift(jnp.fft.fft2(x, axes=(-2, -1), norm='ortho'))
    x_new = x_fre * mask_low * weight + x_fre * mask_high
    return jnp.fft.ifft2(jnp.fft.ifftshift(x_new, axes=(-2, -1)),
                         axes=(-2, -1)).real.astype(jnp.float32)


if __name__ == "__main__":
    B, C, H, W = 2, 4, 32, 32
    key = jax.random.PRNGKey(0)
    kx, kf = jax.random.split(key)

    x = jax.random.normal(kx, (B, C, H, W), jnp.float32)
    # nn.Parameter base_filter: torch.randn(1, 64, 64, 2)
    base_filter = jax.random.normal(kf, (1, 64, 64, 2), jnp.float32)
    wr, wi = make_agf_filter(np.asarray(base_filter), H, W, ratio=10)

    fwd = jax.jit(adaptive_global_filter)
    out = jax.block_until_ready(fwd(x, wr, wi))

    assert out.shape == (B, C, H, W), out.shape
    assert bool(jnp.all(jnp.isfinite(out)))

    # Self-check against a direct jnp replica of the PyTorch forward.
    ref = jax.block_until_ready(_reference_forward(x, base_filter, ratio=10))
    assert bool(jnp.allclose(out, ref, atol=1e-4, rtol=1e-4)), \
        float(jnp.max(jnp.abs(out - ref)))

    print("KERNEL_OK")
</pallas_src>

<mosaic_0001>
module attributes {stable_mosaic.version = 11 : i64} {
  func.func @_freq_filter_kernel(%arg0: i32, %arg1: i32, %arg2: memref<8x1024xf32, #tpu.memory_space<vmem>>, %arg3: memref<8x1024xf32, #tpu.memory_space<vmem>>, %arg4: memref<1x1024xf32, #tpu.memory_space<vmem>>, %arg5: memref<1x1024xf32, #tpu.memory_space<vmem>>, %arg6: memref<8x1024xf32, #tpu.memory_space<vmem>>, %arg7: memref<8x1024xf32, #tpu.memory_space<vmem>>) attributes {dimension_semantics = [#tpu.dimension_semantics<parallel>, #tpu.dimension_semantics<parallel>], iteration_bounds = array<i64: 1, 1>, scalar_prefetch = 0 : i64, scratch_operands = 0 : i64, tpu.core_type = #tpu.core_type<tc>, window_params = [{transform_indices = @transform_0, window_bounds = array<i64: 8, 1024>}, {transform_indices = @transform_1, window_bounds = array<i64: 8, 1024>}, {transform_indices = @transform_2, window_bounds = array<i64: 1, 1024>}, {transform_indices = @transform_3, window_bounds = array<i64: 1, 1024>}, {transform_indices = @transform_4, window_bounds = array<i64: 8, 1024>}, {transform_indices = @transform_5, window_bounds = array<i64: 8, 1024>}]} {
    %c0 = arith.constant 0 : index
    %c0_0 = arith.constant 0 : index
    %0 = vector.load %arg2[%c0, %c0_0] : memref<8x1024xf32, #tpu.memory_space<vmem>>, vector<8x1024xf32>
    %c0_1 = arith.constant 0 : index
    %c0_2 = arith.constant 0 : index
    %1 = vector.load %arg3[%c0_1, %c0_2] : memref<8x1024xf32, #tpu.memory_space<vmem>>, vector<8x1024xf32>
    %c0_3 = arith.constant 0 : index
    %c0_4 = arith.constant 0 : index
    %2 = vector.load %arg4[%c0_3, %c0_4] : memref<1x1024xf32, #tpu.memory_space<vmem>>, vector<1x1024xf32>
    %c0_5 = arith.constant 0 : index
    %c0_6 = arith.constant 0 : index
    %3 = vector.load %arg5[%c0_5, %c0_6] : memref<1x1024xf32, #tpu.memory_space<vmem>>, vector<1x1024xf32>
    %4 = vector.broadcast %2 : vector<1x1024xf32> to vector<8x1024xf32>
    %5 = arith.mulf %0, %4 : vector<8x1024xf32>
    %6 = vector.broadcast %3 : vector<1x1024xf32> to vector<8x1024xf32>
    %7 = arith.mulf %1, %6 : vector<8x1024xf32>
    %8 = arith.subf %5, %7 : vector<8x1024xf32>
    %c0_7 = arith.constant 0 : index
    %c0_8 = arith.constant 0 : index
    %9 = vector.load %arg6[%c0_7, %c0_8] : memref<8x1024xf32, #tpu.memory_space<vmem>>, vector<8x1024xf32>
    tpu.vector_store %arg6[%c0_7, %c0_8], %8 {strides = array<i32>} : memref<8x1024xf32, #tpu.memory_space<vmem>>, vector<8x1024xf32>,
    %10 = vector.broadcast %3 : vector<1x1024xf32> to vector<8x1024xf32>
    %11 = arith.mulf %0, %10 : vector<8x1024xf32>
    %12 = vector.broadcast %2 : vector<1x1024xf32> to vector<8x1024xf32>
    %13 = arith.mulf %1, %12 : vector<8x1024xf32>
    %14 = arith.addf %11, %13 : vector<8x1024xf32>
    %c0_9 = arith.constant 0 : index
    %c0_10 = arith.constant 0 : index
    %15 = vector.load %arg7[%c0_9, %c0_10] : memref<8x1024xf32, #tpu.memory_space<vmem>>, vector<8x1024xf32>
    tpu.vector_store %arg7[%c0_9, %c0_10], %14 {strides = array<i32>} : memref<8x1024xf32, #tpu.memory_space<vmem>>, vector<8x1024xf32>,
    return
  }
  func.func @transform_0(%arg0: i32, %arg1: i32) -> (i32, i32) {
    %c0_i32 = arith.constant 0 : i32
    return %arg0, %arg1 : i32, i32
  }
  func.func @transform_1(%arg0: i32, %arg1: i32) -> (i32, i32) {
    %c0_i32 = arith.constant 0 : i32
    return %arg0, %arg1 : i32, i32
  }
  func.func @transform_2(%arg0: i32, %arg1: i32) -> (i32, i32) {
    %c0_i32 = arith.constant 0 : i32
    %c0_i32_0 = arith.constant 0 : i32
    return %c0_i32, %arg1 : i32, i32
  }
  func.func @transform_3(%arg0: i32, %arg1: i32) -> (i32, i32) {
    %c0_i32 = arith.constant 0 : i32
    %c0_i32_0 = arith.constant 0 : i32
    return %c0_i32, %arg1 : i32, i32
  }
  func.func @transform_4(%arg0: i32, %arg1: i32) -> (i32, i32) {
    %c0_i32 = arith.constant 0 : i32
    return %arg0, %arg1 : i32, i32
  }
  func.func @transform_5(%arg0: i32, %arg1: i32) -> (i32, i32) {
    %c0_i32 = arith.constant 0 : i32
    return %arg0, %arg1 : i32, i32
  }
}

</mosaic_0001>

<llo_original>
// kernel: adaptive_global_filter.1
$region0: #{adaptive_global_filter.1}
  #allocation0 [shape = 'u32[]', space=smem, size = 0x4, offset = 0x4, fixed_abs, tag = 'smem constant byte address 0x4 - core index']
  #allocation1 [shape = 'u32[144,128]{1,0:T(1,128)}', space=vmem, size = 0x12000, scoped, tag = 'internal scratch']
  %s0 = inlined_call_operand.vmem [shape: f32[8,1024], index: 0, kind: input, shape index: {}]
  %s1 = inlined_call_operand.vmem [shape: f32[8,1024], index: 1, kind: input, shape index: {}]
  %s2 = inlined_call_operand.vmem [shape: f32[1,1024], index: 2, kind: input, shape index: {}]
  %s3 = inlined_call_operand.vmem [shape: f32[1,1024], index: 3, kind: input, shape index: {}]
  %s4 = inlined_call_operand.vmem [shape: f32[8,1024], index: 4, kind: output, shape index: {0}]
  %s5 = inlined_call_operand.vmem [shape: f32[8,1024], index: 5, kind: output, shape index: {1}]
  %6 = xla_tuple %s4, %s5
  %s7 = sld [smem:[#allocation0]]
  $region34: #{adaptive_global_filter.1} parent=0
    _
  %s9 = ssub.s32 1, %s7
  %s10 = scalar_select 0, %s9, %s7
  // Predicated region
  $region2: #{adaptive_global_filter.1} parent=0 // pred_check
    _
  $region3: #{adaptive_global_filter.1} parent=0 // pred_check_branch
    %12 = sbr.rel (0) target = $region5
  $region4: #{adaptive_global_filter.1} parent=0 // pred_region
    _
  $region5: #{adaptive_global_filter.1} parent=0 // pred_fallthru
    _
  // Predicated region
  $region6: #{adaptive_global_filter.1} parent=0 // pred_check
    _
  $region7: #{adaptive_global_filter.1} parent=0 // pred_check_branch
    %14 = sbr.rel (0) target = $region9
  $region8: #{adaptive_global_filter.1} parent=0 // pred_region
    _
  $region9: #{adaptive_global_filter.1} parent=0 // pred_fallthru
    _
  // Predicated region
  $region10: #{adaptive_global_filter.1} parent=0 // pred_check
    _
  $region11: #{adaptive_global_filter.1} parent=0 // pred_check_branch
    %16 = sbr.rel (0) target = $region13
  $region12: #{adaptive_global_filter.1} parent=0 // pred_region
    _
  $region13: #{adaptive_global_filter.1} parent=0 // pred_fallthru
    _
  // Predicated region
  $region14: #{adaptive_global_filter.1} parent=0 // pred_check
    _
  $region15: #{adaptive_global_filter.1} parent=0 // pred_check_branch
    %18 = sbr.rel (0) target = $region17
  $region16: #{adaptive_global_filter.1} parent=0 // pred_region
    _
  $region17: #{adaptive_global_filter.1} parent=0 // pred_fallthru
    _
  %v19 = vld [vmem:[%s0] sm:$0xff]
  %v20 = vld [vmem:[%s0 + $0x8] sm:$0xff]
  %v21 = vld [vmem:[%s0 + $0x10] sm:$0xff]
  %v22 = vld [vmem:[%s0 + $0x18] sm:$0xff]
  %v23 = vld [vmem:[%s0 + $0x20] sm:$0xff]
  %v24 = vld [vmem:[%s0 + $0x28] sm:$0xff]
  %v25 = vld [vmem:[%s0 + $0x30] sm:$0xff]
  %v26 = vld [vmem:[%s0 + $0x38] sm:$0xff]
  %v27 = vld [vmem:[%s1] sm:$0xff]
  %v28 = vld [vmem:[%s1 + $0x8] sm:$0xff]
  %v29 = vld [vmem:[%s1 + $0x10] sm:$0xff]
  %v30 = vld [vmem:[%s1 + $0x18] sm:$0xff]
  %v31 = vld [vmem:[%s1 + $0x20] sm:$0xff]
  %v32 = vld [vmem:[%s1 + $0x28] sm:$0xff]
  %v33 = vld [vmem:[%s1 + $0x30] sm:$0xff]
  %v34 = vld [vmem:[%s1 + $0x38] sm:$0xff]
  %v35 = vld [vmem:[%s2] sm:$0xff]
  %v36 = vld [vmem:[%s3] sm:$0xff]
  %v38 = vlaneseq
  %v39 = vshrl.u32 %v38, 7
  %v40 = vsub.s32 0, %v39
  %v41 = vrot.slane %v35, %v40
  %v42 = vlaneseq
  %v43 = vshrl.u32 %v42, 7
  %v44 = vsub.s32 1, %v43
  %v45 = vrot.slane %v35, %v44
  %v46 = vlaneseq
  %v47 = vshrl.u32 %v46, 7
  %v48 = vsub.s32 2, %v47
  %v49 = vrot.slane %v35, %v48
  %v50 = vlaneseq
  %v51 = vshrl.u32 %v50, 7
  %v52 = vsub.s32 3, %v51
  %v53 = vrot.slane %v35, %v52
  %v54 = vlaneseq
  %v55 = vshrl.u32 %v54, 7
  %v56 = vsub.s32 4, %v55
  %v57 = vrot.slane %v35, %v56
  %v58 = vlaneseq
  %v59 = vshrl.u32 %v58, 7
  %v60 = vsub.s32 5, %v59
  %v61 = vrot.slane %v35, %v60
  %v62 = vlaneseq
  %v63 = vshrl.u32 %v62, 7
  %v64 = vsub.s32 6, %v63
  %v65 = vrot.slane %v35, %v64
  %v66 = vlaneseq
  %v67 = vshrl.u32 %v66, 7
  %v68 = vsub.s32 7, %v67
  %v69 = vrot.slane %v35, %v68
  %v78 = vmul.f32 %v19, %v41
  %v79 = vmul.f32 %v20, %v45
  %v80 = vmul.f32 %v21, %v49
  %v81 = vmul.f32 %v22, %v53
  %v82 = vmul.f32 %v23, %v57
  %v83 = vmul.f32 %v24, %v61
  %v84 = vmul.f32 %v25, %v65
  %v85 = vmul.f32 %v26, %v69
  %v87 = vlaneseq
  %v88 = vshrl.u32 %v87, 7
  %v89 = vsub.s32 0, %v88
  %v90 = vrot.slane %v36, %v89
  %v91 = vlaneseq
  %v92 = vshrl.u32 %v91, 7
  %v93 = vsub.s32 1, %v92
  %v94 = vrot.slane %v36, %v93
  %v95 = vlaneseq
  %v96 = vshrl.u32 %v95, 7
  %v97 = vsub.s32 2, %v96
  %v98 = vrot.slane %v36, %v97
  %v99 = vlaneseq
  %v100 = vshrl.u32 %v99, 7
  %v101 = vsub.s32 3, %v100
  %v102 = vrot.slane %v36, %v101
  %v103 = vlaneseq
  %v104 = vshrl.u32 %v103, 7
  %v105 = vsub.s32 4, %v104
  %v106 = vrot.slane %v36, %v105
  %v107 = vlaneseq
  %v108 = vshrl.u32 %v107, 7
  %v109 = vsub.s32 5, %v108
  %v110 = vrot.slane %v36, %v109
  %v111 = vlaneseq
  %v112 = vshrl.u32 %v111, 7
  %v113 = vsub.s32 6, %v112
  %v114 = vrot.slane %v36, %v113
  %v115 = vlaneseq
  %v116 = vshrl.u32 %v115, 7
  %v117 = vsub.s32 7, %v116
  %v118 = vrot.slane %v36, %v117
  %v127 = vmul.f32 %v27, %v90
  %v128 = vmul.f32 %v28, %v94
  %v129 = vmul.f32 %v29, %v98
  %v130 = vmul.f32 %v30, %v102
  %v131 = vmul.f32 %v31, %v106
  %v132 = vmul.f32 %v32, %v110
  %v133 = vmul.f32 %v33, %v114
  %v134 = vmul.f32 %v34, %v118
  %v135 = vsub.f32 %v78, %v127
  %v136 = vsub.f32 %v79, %v128
  %v137 = vsub.f32 %v80, %v129
  %v138 = vsub.f32 %v81, %v130
  %v139 = vsub.f32 %v82, %v131
  %v140 = vsub.f32 %v83, %v132
  %v141 = vsub.f32 %v84, %v133
  %v142 = vsub.f32 %v85, %v134
  %143 = vst [vmem:[%s4] sm:$0xff] %v135
  %144 = vst [vmem:[%s4 + $0x8] sm:$0xff] %v136
  %145 = vst [vmem:[%s4 + $0x10] sm:$0xff] %v137
  %146 = vst [vmem:[%s4 + $0x18] sm:$0xff] %v138
  %147 = vst [vmem:[%s4 + $0x20] sm:$0xff] %v139
  %148 = vst [vmem:[%s4 + $0x28] sm:$0xff] %v140
  %149 = vst [vmem:[%s4 + $0x30] sm:$0xff] %v141
  %150 = vst [vmem:[%s4 + $0x38] sm:$0xff] %v142
  %v151 = vmul.f32 %v19, %v90
  %v152 = vmul.f32 %v20, %v94
  %v153 = vmul.f32 %v21, %v98
  %v154 = vmul.f32 %v22, %v102
  %v155 = vmul.f32 %v23, %v106
  %v156 = vmul.f32 %v24, %v110
  %v157 = vmul.f32 %v25, %v114
  %v158 = vmul.f32 %v26, %v118
  %v159 = vmul.f32 %v27, %v41
  %v160 = vmul.f32 %v28, %v45
  %v161 = vmul.f32 %v29, %v49
  %v162 = vmul.f32 %v30, %v53
  %v163 = vmul.f32 %v31, %v57
  %v164 = vmul.f32 %v32, %v61
  %v165 = vmul.f32 %v33, %v65
  %v166 = vmul.f32 %v34, %v69
  %v167 = vadd.f32 %v151, %v159
  %v168 = vadd.f32 %v152, %v160
  %v169 = vadd.f32 %v153, %v161
  %v170 = vadd.f32 %v154, %v162
  %v171 = vadd.f32 %v155, %v163
  %v172 = vadd.f32 %v156, %v164
  %v173 = vadd.f32 %v157, %v165
  %v174 = vadd.f32 %v158, %v166
  %175 = vst [vmem:[%s5] sm:$0xff] %v167
  %176 = vst [vmem:[%s5 + $0x8] sm:$0xff] %v168
  %177 = vst [vmem:[%s5 + $0x10] sm:$0xff] %v169
  %178 = vst [vmem:[%s5 + $0x18] sm:$0xff] %v170
  %179 = vst [vmem:[%s5 + $0x20] sm:$0xff] %v171
  %180 = vst [vmem:[%s5 + $0x28] sm:$0xff] %v172
  %181 = vst [vmem:[%s5 + $0x30] sm:$0xff] %v173
  %182 = vst [vmem:[%s5 + $0x38] sm:$0xff] %v174
  // Predicated region
  $region18: #{adaptive_global_filter.1} parent=0 // pred_check
    _
  $region19: #{adaptive_global_filter.1} parent=0 // pred_check_branch
    %184 = sbr.rel (0) target = $region21
  $region20: #{adaptive_global_filter.1} parent=0 // pred_region
    _
  $region21: #{adaptive_global_filter.1} parent=0 // pred_fallthru
    _
  // Predicated region
  $region22: #{adaptive_global_filter.1} parent=0 // pred_check
    _
  $region23: #{adaptive_global_filter.1} parent=0 // pred_check_branch
    %186 = sbr.rel (0) target = $region25
  $region24: #{adaptive_global_filter.1} parent=0 // pred_region
    _
  $region25: #{adaptive_global_filter.1} parent=0 // pred_fallthru
    _
  // Predicated region
  $region26: #{adaptive_global_filter.1} parent=0 // pred_check
    _
  $region27: #{adaptive_global_filter.1} parent=0 // pred_check_branch
    %188 = sbr.rel (0) target = $region29
  $region28: #{adaptive_global_filter.1} parent=0 // pred_region
    _
  $region29: #{adaptive_global_filter.1} parent=0 // pred_fallthru
    _
  // Predicated region
  $region30: #{adaptive_global_filter.1} parent=0 // pred_check
    _
  $region31: #{adaptive_global_filter.1} parent=0 // pred_check_branch
    %190 = sbr.rel (0) target = $region33
  $region32: #{adaptive_global_filter.1} parent=0 // pred_region
    _
  $region33: #{adaptive_global_filter.1} parent=0 // pred_fallthru
    _

</llo_original>
